<compile_context>
chip_gen: v6e
topology: v6e:2x2x1
jax: 0.10.0
libtpu: 0.0.40
codegen_flags: <defaults>
</compile_context>

<pallas_src>
import jax
import jax.numpy as jnp
from jax import lax
from jax.experimental import pallas as pl
from jax.experimental.pallas import tpu as pltpu

# real (PyTorch) sizes
DIN, DH, DOUT = 100, 200, 784
# lane-padded sizes used inside the kernel
DIN_P, DH_P, DOUT_P = 128, 256, 896


def _round_up(x, m):
    return (x + m - 1) // m * m


def generator_kernel(x_ref, w1_ref, b1_ref, g_ref, beta_ref, w2_ref, b2_ref, o_ref):
    # x_ref: (tb, DIN_P) tile of the (padded) batch; padded lanes are zero.
    x = x_ref[...]

    # Linear 1: (tb,128) @ (128,256) + (1,256).  Padded W1 cols / b1 lanes are zero,
    # so h[:, 200:] == 0 exactly.
    h = jnp.dot(x, w1_ref[...], preferred_element_type=jnp.float32) + b1_ref[...]

    # LayerNorm over the real 200 lanes (eps = 1e-5, affine).
    inv_n = 1.0 / DH
    mean = jnp.sum(h, axis=-1, keepdims=True) * inv_n  # padded lanes are 0 -> exact sum
    col = lax.broadcasted_iota(jnp.int32, h.shape, 1)
    real = (col < DH).astype(jnp.float32)
    d = (h - mean) * real                               # mask padded lanes out of variance
    var = jnp.sum(d * d, axis=-1, keepdims=True) * inv_n
    hn = (h - mean) * lax.rsqrt(var + 1e-5)
    # gamma/beta are zero on padded lanes -> hn[:, 200:] == 0 after the affine.
    hn = hn * g_ref[...] + beta_ref[...]

    # LeakyReLU(0.02)
    hn = jnp.where(hn >= 0.0, hn, 0.02 * hn)

    # Linear 2: (tb,256) @ (256,896) + (1,896).  Padded W2 rows are zero -> exact.
    y = jnp.dot(hn, w2_ref[...], preferred_element_type=jnp.float32) + b2_ref[...]

    # Sigmoid via tanh: one EUP transcendental, no divide.
    o_ref[...] = (0.5 * (jnp.tanh(0.5 * y) + 1.0)).astype(o_ref.dtype)


def generator_forward(x, w1, b1, gamma, beta, w2, b2, *, tb=256):
    B, din = x.shape
    assert din == DIN

    # Batch tile: big enough to amortize per-step overhead and feed the MXU,
    # but never larger than the (8-row rounded) batch itself.
    tb_eff = min(tb, _round_up(B, 8))
    Bp = _round_up(B, tb_eff)

    f32 = jnp.float32
    # Zero-pad inputs / parameters to lane-friendly shapes (numerically exact).
    xp = jnp.zeros((Bp, DIN_P), f32).at[:B, :DIN].set(x.astype(f32))
    w1p = jnp.zeros((DIN_P, DH_P), f32).at[:DIN, :DH].set(w1.astype(f32))
    b1p = jnp.zeros((1, DH_P), f32).at[:, :DH].set(b1.reshape(1, DH).astype(f32))
    gp = jnp.zeros((1, DH_P), f32).at[:, :DH].set(gamma.reshape(1, DH).astype(f32))
    bp = jnp.zeros((1, DH_P), f32).at[:, :DH].set(beta.reshape(1, DH).astype(f32))
    w2p = jnp.zeros((DH_P, DOUT_P), f32).at[:DH, :DOUT].set(w2.astype(f32))
    b2p = jnp.zeros((1, DOUT_P), f32).at[:, :DOUT].set(b2.reshape(1, DOUT).astype(f32))

    grid = (Bp // tb_eff,)

    cost = pl.CostEstimate(
        flops=2 * Bp * (DIN_P * DH_P + DH_P * DOUT_P),
        transcendentals=Bp * DOUT_P,
        bytes_accessed=4 * (Bp * DIN_P + Bp * DOUT_P
                            + DIN_P * DH_P + DH_P * DOUT_P + 3 * DH_P + DOUT_P),
    )

    out_p = pl.pallas_call(
        generator_kernel,
        out_shape=jax.ShapeDtypeStruct((Bp, DOUT_P), f32),
        grid_spec=pltpu.PrefetchScalarGridSpec(
            num_scalar_prefetch=0,
            grid=grid,
            in_specs=[
                pl.BlockSpec((tb_eff, DIN_P), lambda i: (i, 0)),   # x tile
                pl.BlockSpec((DIN_P, DH_P), lambda i: (0, 0)),     # W1 (resident)
                pl.BlockSpec((1, DH_P), lambda i: (0, 0)),         # b1
                pl.BlockSpec((1, DH_P), lambda i: (0, 0)),         # LN gamma
                pl.BlockSpec((1, DH_P), lambda i: (0, 0)),         # LN beta
                pl.BlockSpec((DH_P, DOUT_P), lambda i: (0, 0)),    # W2 (resident)
                pl.BlockSpec((1, DOUT_P), lambda i: (0, 0)),       # b2
            ],
            out_specs=pl.BlockSpec((tb_eff, DOUT_P), lambda i: (i, 0)),
        ),
        compiler_params=pltpu.CompilerParams(
            dimension_semantics=("parallel",),
        ),
        cost_estimate=cost,
    )(xp, w1p, b1p, gp, bp, w2p, b2p)

    # Strip batch / lane padding.
    return out_p[:B, :DOUT]


def init_params(key):
    """Deterministic parameter init mimicking PyTorch defaults (U(-1/sqrt(fan_in), +))."""
    k1, k2, k3, k4 = jax.random.split(key, 4)

    bound1 = 1.0 / jnp.sqrt(DIN)
    w1 = jax.random.uniform(k1, (DIN, DH), jnp.float32, -bound1, bound1)
    b1 = jax.random.uniform(k2, (1, DH), jnp.float32, -bound1, bound1)

    gamma = jnp.ones((1, DH), jnp.float32)
    beta = jnp.zeros((1, DH), jnp.float32)

    bound2 = 1.0 / jnp.sqrt(DH)
    w2 = jax.random.uniform(k3, (DH, DOUT), jnp.float32, -bound2, bound2)
    b2 = jax.random.uniform(k4, (1, DOUT), jnp.float32, -bound2, bound2)

    return w1, b1, gamma, beta, w2, b2


def reference_forward(x, w1, b1, gamma, beta, w2, b2):
    h = x @ w1 + b1
    mean = jnp.mean(h, axis=-1, keepdims=True)
    var = jnp.mean((h - mean) ** 2, axis=-1, keepdims=True)
    h = (h - mean) / jnp.sqrt(var + 1e-5)
    h = h * gamma + beta
    h = jnp.where(h >= 0, h, 0.02 * h)
    y = h @ w2 + b2
    return jax.nn.sigmoid(y)


if __name__ == "__main__":
    key = jax.random.PRNGKey(0)
    kp, kx = jax.random.split(key)

    params = init_params(kp)

    B = 8  # small batch for the check; wrapper tiles/pads automatically for big B
    x = jax.random.normal(kx, (B, DIN), jnp.float32)

    out = generator_forward(x, *params)
    out = jax.block_until_ready(out)

    ref = reference_forward(x, *params)
    assert out.shape == (B, DOUT)
    assert jnp.allclose(out, ref, atol=2e-5, rtol=2e-5), "mismatch vs reference"

    print("KERNEL_OK")
</pallas_src>

<mosaic_0001>
module attributes {stable_mosaic.version = 11 : i64} {
  func.func @generator_kernel(%arg0: i32, %arg1: memref<8x128xf32, #tpu.memory_space<vmem>>, %arg2: memref<128x256xf32, #tpu.memory_space<vmem>>, %arg3: memref<1x256xf32, #tpu.memory_space<vmem>>, %arg4: memref<1x256xf32, #tpu.memory_space<vmem>>, %arg5: memref<1x256xf32, #tpu.memory_space<vmem>>, %arg6: memref<256x896xf32, #tpu.memory_space<vmem>>, %arg7: memref<1x896xf32, #tpu.memory_space<vmem>>, %arg8: memref<8x896xf32, #tpu.memory_space<vmem>>) attributes {dimension_semantics = [#tpu.dimension_semantics<parallel>], iteration_bounds = array<i64: 1>, scalar_prefetch = 0 : i64, scratch_operands = 0 : i64, tpu.core_type = #tpu.core_type<tc>, window_params = [{transform_indices = @transform_0, window_bounds = array<i64: 8, 128>}, {pipeline_mode = #tpu.pipeline_mode<synchronous>, transform_indices = @transform_1, window_bounds = array<i64: 128, 256>}, {pipeline_mode = #tpu.pipeline_mode<synchronous>, transform_indices = @transform_2, window_bounds = array<i64: 1, 256>}, {pipeline_mode = #tpu.pipeline_mode<synchronous>, transform_indices = @transform_3, window_bounds = array<i64: 1, 256>}, {pipeline_mode = #tpu.pipeline_mode<synchronous>, transform_indices = @transform_4, window_bounds = array<i64: 1, 256>}, {pipeline_mode = #tpu.pipeline_mode<synchronous>, transform_indices = @transform_5, window_bounds = array<i64: 256, 896>}, {pipeline_mode = #tpu.pipeline_mode<synchronous>, transform_indices = @transform_6, window_bounds = array<i64: 1, 896>}, {transform_indices = @transform_7, window_bounds = array<i64: 8, 896>}]} {
    %c0 = arith.constant 0 : index
    %c0_0 = arith.constant 0 : index
    %0 = vector.load %arg1[%c0, %c0_0] : memref<8x128xf32, #tpu.memory_space<vmem>>, vector<8x128xf32>
    %c0_1 = arith.constant 0 : index
    %c0_2 = arith.constant 0 : index
    %1 = vector.load %arg2[%c0_1, %c0_2] : memref<128x256xf32, #tpu.memory_space<vmem>>, vector<128x256xf32>
    %cst = arith.constant dense<0.000000e+00> : vector<8x256xf32>
    %2 = tpu.matmul %0, %1, %cst {dimension_numbers = #tpu.dot_dimension_numbers<[1], [0], [0], [1], [0, 0, 1, 1], [], []>} : vector<8x128xf32>, vector<128x256xf32>, vector<8x256xf32> -> vector<8x256xf32>
    %c0_3 = arith.constant 0 : index
    %c0_4 = arith.constant 0 : index
    %3 = vector.load %arg3[%c0_3, %c0_4] : memref<1x256xf32, #tpu.memory_space<vmem>>, vector<1x256xf32>
    %4 = vector.broadcast %3 : vector<1x256xf32> to vector<8x256xf32>
    %5 = arith.addf %2, %4 : vector<8x256xf32>
    %cst_5 = arith.constant dense<0.000000e+00> : vector<8xf32>
    %6 = vector.multi_reduction <add>, %5, %cst_5 [1] : vector<8x256xf32> to vector<8xf32>
    %7 = vector.shape_cast %6 : vector<8xf32> to vector<8x1xf32>
    %cst_6 = arith.constant 5.000000e-03 : f32
    %8 = vector.broadcast %cst_6 : f32 to vector<8x1xf32>
    %9 = arith.mulf %7, %8 : vector<8x1xf32>
    %10 = tpu.iota {dimensions = array<i32: 1>} : vector<8x256xi32>
    %c200_i32 = arith.constant 200 : i32
    %11 = vector.broadcast %c200_i32 : i32 to vector<8x256xi32>
    %12 = arith.cmpi slt, %10, %11 : vector<8x256xi32>
    %13 = arith.extui %12 : vector<8x256xi1> to vector<8x256xi32>
    %14 = arith.sitofp %13 : vector<8x256xi32> to vector<8x256xf32>
    %15 = vector.broadcast %9 : vector<8x1xf32> to vector<8x256xf32>
    %16 = arith.subf %5, %15 : vector<8x256xf32>
    %17 = arith.mulf %16, %14 : vector<8x256xf32>
    %18 = arith.mulf %17, %17 : vector<8x256xf32>
    %cst_7 = arith.constant dense<0.000000e+00> : vector<8xf32>
    %19 = vector.multi_reduction <add>, %18, %cst_7 [1] : vector<8x256xf32> to vector<8xf32>
    %20 = vector.shape_cast %19 : vector<8xf32> to vector<8x1xf32>
    %cst_8 = arith.constant 5.000000e-03 : f32
    %21 = vector.broadcast %cst_8 : f32 to vector<8x1xf32>
    %22 = arith.mulf %20, %21 : vector<8x1xf32>
    %23 = vector.broadcast %9 : vector<8x1xf32> to vector<8x256xf32>
    %24 = arith.subf %5, %23 : vector<8x256xf32>
    %cst_9 = arith.constant 9.99999974E-6 : f32
    %25 = vector.broadcast %cst_9 : f32 to vector<8x1xf32>
    %26 = arith.addf %22, %25 : vector<8x1xf32>
    %27 = math.rsqrt %26 : vector<8x1xf32>
    %28 = vector.broadcast %27 : vector<8x1xf32> to vector<8x256xf32>
    %29 = arith.mulf %24, %28 : vector<8x256xf32>
    %c0_10 = arith.constant 0 : index
    %c0_11 = arith.constant 0 : index
    %30 = vector.load %arg4[%c0_10, %c0_11] : memref<1x256xf32, #tpu.memory_space<vmem>>, vector<1x256xf32>
    %31 = vector.broadcast %30 : vector<1x256xf32> to vector<8x256xf32>
    %32 = arith.mulf %29, %31 : vector<8x256xf32>
    %c0_12 = arith.constant 0 : index
    %c0_13 = arith.constant 0 : index
    %33 = vector.load %arg5[%c0_12, %c0_13] : memref<1x256xf32, #tpu.memory_space<vmem>>, vector<1x256xf32>
    %34 = vector.broadcast %33 : vector<1x256xf32> to vector<8x256xf32>
    %35 = arith.addf %32, %34 : vector<8x256xf32>
    %cst_14 = arith.constant 0.000000e+00 : f32
    %36 = vector.broadcast %cst_14 : f32 to vector<8x256xf32>
    %37 = arith.cmpf oge, %35, %36 : vector<8x256xf32>
    %cst_15 = arith.constant 2.000000e-02 : f32
    %38 = vector.broadcast %cst_15 : f32 to vector<8x256xf32>
    %39 = arith.mulf %38, %35 : vector<8x256xf32>
    %40 = arith.select %37, %35, %39 : vector<8x256xi1>, vector<8x256xf32>
    %c0_16 = arith.constant 0 : index
    %c0_17 = arith.constant 0 : index
    %41 = vector.load %arg6[%c0_16, %c0_17] : memref<256x896xf32, #tpu.memory_space<vmem>>, vector<256x896xf32>
    %cst_18 = arith.constant dense<0.000000e+00> : vector<8x896xf32>
    %42 = tpu.matmul %40, %41, %cst_18 {dimension_numbers = #tpu.dot_dimension_numbers<[1], [0], [0], [1], [0, 0, 1, 1], [], []>} : vector<8x256xf32>, vector<256x896xf32>, vector<8x896xf32> -> vector<8x896xf32>
    %c0_19 = arith.constant 0 : index
    %c0_20 = arith.constant 0 : index
    %43 = vector.load %arg7[%c0_19, %c0_20] : memref<1x896xf32, #tpu.memory_space<vmem>>, vector<1x896xf32>
    %44 = vector.broadcast %43 : vector<1x896xf32> to vector<8x896xf32>
    %45 = arith.addf %42, %44 : vector<8x896xf32>
    %cst_21 = arith.constant 5.000000e-01 : f32
    %46 = vector.broadcast %cst_21 : f32 to vector<8x896xf32>
    %47 = arith.mulf %46, %45 : vector<8x896xf32>
    %48 = math.tanh %47 : vector<8x896xf32>
    %cst_22 = arith.constant 1.000000e+00 : f32
    %49 = vector.broadcast %cst_22 : f32 to vector<8x896xf32>
    %50 = arith.addf %48, %49 : vector<8x896xf32>
    %cst_23 = arith.constant 5.000000e-01 : f32
    %51 = vector.broadcast %cst_23 : f32 to vector<8x896xf32>
    %52 = arith.mulf %51, %50 : vector<8x896xf32>
    %c0_24 = arith.constant 0 : index
    %c0_25 = arith.constant 0 : index
    %53 = vector.load %arg8[%c0_24, %c0_25] : memref<8x896xf32, #tpu.memory_space<vmem>>, vector<8x896xf32>
    tpu.vector_store %arg8[%c0_24, %c0_25], %52 {strides = array<i32>} : memref<8x896xf32, #tpu.memory_space<vmem>>, vector<8x896xf32>,
    return
  }
  func.func @transform_0(%arg0: i32) -> (i32, i32) {
    %c0_i32 = arith.constant 0 : i32
    %c0_i32_0 = arith.constant 0 : i32
    return %arg0, %c0_i32 : i32, i32
  }
  func.func @transform_1(%arg0: i32) -> (i32, i32) {
    %c0_i32 = arith.constant 0 : i32
    %c0_i32_0 = arith.constant 0 : i32
    %c0_i32_1 = arith.constant 0 : i32
    return %c0_i32, %c0_i32_0 : i32, i32
  }
  func.func @transform_2(%arg0: i32) -> (i32, i32) {
    %c0_i32 = arith.constant 0 : i32
    %c0_i32_0 = arith.constant 0 : i32
    %c0_i32_1 = arith.constant 0 : i32
    return %c0_i32, %c0_i32_0 : i32, i32
  }
  func.func @transform_3(%arg0: i32) -> (i32, i32) {
    %c0_i32 = arith.constant 0 : i32
    %c0_i32_0 = arith.constant 0 : i32
    %c0_i32_1 = arith.constant 0 : i32
    return %c0_i32, %c0_i32_0 : i32, i32
  }
  func.func @transform_4(%arg0: i32) -> (i32, i32) {
    %c0_i32 = arith.constant 0 : i32
    %c0_i32_0 = arith.constant 0 : i32
    %c0_i32_1 = arith.constant 0 : i32
    return %c0_i32, %c0_i32_0 : i32, i32
  }
  func.func @transform_5(%arg0: i32) -> (i32, i32) {
    %c0_i32 = arith.constant 0 : i32
    %c0_i32_0 = arith.constant 0 : i32
    %c0_i32_1 = arith.constant 0 : i32
    return %c0_i32, %c0_i32_0 : i32, i32
  }
  func.func @transform_6(%arg0: i32) -> (i32, i32) {
    %c0_i32 = arith.constant 0 : i32
    %c0_i32_0 = arith.constant 0 : i32
    %c0_i32_1 = arith.constant 0 : i32
    return %c0_i32, %c0_i32_0 : i32, i32
  }
  func.func @transform_7(%arg0: i32) -> (i32, i32) {
    %c0_i32 = arith.constant 0 : i32
    %c0_i32_0 = arith.constant 0 : i32
    return %arg0, %c0_i32 : i32, i32
  }
}

</mosaic_0001>

<llo_original>
// kernel: tpu_custom_call.1
$region0: #{tpu_custom_call.1}
  #allocation0 [shape = 'u32[]', space=smem, size = 0x4, offset = 0x4, fixed_abs, tag = 'smem constant byte address 0x4 - core index']
  #allocation1 [shape = 'u32[144,128]{1,0:T(1,128)}', space=vmem, size = 0x12000, scoped, tag = 'internal scratch']
  %s0 = inlined_call_operand.hbm [shape: f32[8,128], index: 0, kind: input, shape index: {}]
  %s1 = inlined_call_operand.hbm [shape: f32[128,256], index: 1, kind: input, shape index: {}]
  %s2 = inlined_call_operand.vmem [shape: f32[1,256], index: 2, kind: input, shape index: {}]
  %s3 = inlined_call_operand.hbm [shape: f32[1,256], index: 3, kind: input, shape index: {}]
  %s4 = inlined_call_operand.hbm [shape: f32[1,256], index: 4, kind: input, shape index: {}]
  %s5 = inlined_call_operand.hbm [shape: f32[256,896], index: 5, kind: input, shape index: {}]
  %s6 = inlined_call_operand.vmem [shape: f32[1,896], index: 6, kind: input, shape index: {}]
  %s7 = inlined_call_operand.hbm [shape: f32[8,896], index: 7, kind: output, shape index: {}]
  %s8 = sld [smem:[#allocation0]]
  $region58: #{tpu_custom_call.1} parent=0
    _
  %s10 = ssub.s32 1, %s8
  %s11 = scalar_select 0, %s10, %s8
  $region1: #{tpu_custom_call.1} parent=0
    #allocation2 [shape = 'u8[4096]{0}', space=vmem, size = 0x1000, scoped, tag = 'input window, operand 0, single buffered']
    #allocation3 [shape = 's32[1]{0}', space=sflag, size = 0x4, scoped, tag = 'scoped memory for tpu_custom_call.1']
    #allocation4 [shape = 's32[1]{0}', space=sflag, size = 0x4, scoped, tag = 'scoped memory for tpu_custom_call.1']
    #allocation5 [shape = 'u8[131072]{0}', space=vmem, size = 0x20000, scoped, tag = 'input window, operand 1, single buffered']
    #allocation6 [shape = 's32[1]{0}', space=sflag, size = 0x4, scoped, tag = 'scoped memory for tpu_custom_call.1']
    #allocation7 [shape = 'u8[1024]{0}', space=vmem, size = 0x400, scoped, tag = 'input window, operand 3, single buffered']
    #allocation8 [shape = 'u8[1024]{0}', space=vmem, size = 0x400, scoped, tag = 'input window, operand 4, single buffered']
    #allocation9 [shape = 's32[1]{0}', space=sflag, size = 0x4, scoped, tag = 'scoped memory for tpu_custom_call.1']
    #allocation10 [shape = 'u8[917504]{0}', space=vmem, size = 0xe0000, scoped, tag = 'input window, operand 5, single buffered']
    #allocation11 [shape = 'u8[28672]{0}', space=vmem, size = 0x7000, scoped, tag = 'output window, operand 0, single buffered']
    %12 = vsyncpa [#allocation3], 0
    %13 = vsyncpa [#allocation6], 0
    %14 = vsyncpa [#allocation9], 0
    %15 = vsyncpa [#allocation4], 0
    // Predicated region
    $region2: #{tpu_custom_call.1} parent=1 // pred_check
      _
    $region3: #{tpu_custom_call.1} parent=1 // pred_check_branch
      %17 = sbr.rel (0) target = $region5
    $region4: #{tpu_custom_call.1} parent=1 // pred_region
      %s19 = ssub.s32 128, 128
      %20 = vsyncadd [#allocation3], %s19
      %s22 = sshll.u32 [#allocation2], 4
      %s23 = int_to_ptr.vmem [resolvable:$true] %s22
      %25 = dma.hbm_to_vmem [thread:$0]  %s0, 128, %s23, [#allocation3]
    $region5: #{tpu_custom_call.1} parent=1 // pred_fallthru
      _
    // Predicated region
    $region6: #{tpu_custom_call.1} parent=1 // pred_check
      _
    $region7: #{tpu_custom_call.1} parent=1 // pred_check_branch
      %27 = sbr.rel (0) target = $region9
    $region8: #{tpu_custom_call.1} parent=1 // pred_region
      %s29 = ssub.s32 4096, 4096
      %30 = vsyncadd [#allocation6], %s29
      %s31 = sshll.u32 [#allocation5], 4
      %s32 = int_to_ptr.vmem [resolvable:$true] %s31
      %37 = dma.hbm_to_vmem [thread:$0]  %s1, 4096, %s32, [#allocation6], 256, 256, 16
    $region9: #{tpu_custom_call.1} parent=1 // pred_fallthru
      _
    // Predicated region
    $region10: #{tpu_custom_call.1} parent=1 // pred_check
      _
    $region11: #{tpu_custom_call.1} parent=1 // pred_check_branch
      %39 = sbr.rel (0) target = $region13
    $region12: #{tpu_custom_call.1} parent=1 // pred_region
      _
    $region13: #{tpu_custom_call.1} parent=1 // pred_fallthru
      _
    // Predicated region
    $region14: #{tpu_custom_call.1} parent=1 // pred_check
      _
    $region15: #{tpu_custom_call.1} parent=1 // pred_check_branch
      %41 = sbr.rel (0) target = $region17
    $region16: #{tpu_custom_call.1} parent=1 // pred_region
      %s43 = ssub.s32 32, 32
      %44 = vsyncadd [#allocation6], %s43
      %s46 = sshll.u32 [#allocation7], 4
      %s47 = int_to_ptr.vmem [resolvable:$true] %s46
      %49 = dma.hbm_to_vmem [thread:$0]  %s3, 32, %s47, [#allocation6]
    $region17: #{tpu_custom_call.1} parent=1 // pred_fallthru
      _
    // Predicated region
    $region18: #{tpu_custom_call.1} parent=1 // pred_check
      _
    $region19: #{tpu_custom_call.1} parent=1 // pred_check_branch
      %51 = sbr.rel (0) target = $region21
    $region20: #{tpu_custom_call.1} parent=1 // pred_region
      %s53 = ssub.s32 32, 32
      %54 = vsyncadd [#allocation9], %s53
      %s56 = sshll.u32 [#allocation8], 4
      %s57 = int_to_ptr.vmem [resolvable:$true] %s56
      %59 = dma.hbm_to_vmem [thread:$0]  %s4, 32, %s57, [#allocation9]
    $region21: #{tpu_custom_call.1} parent=1 // pred_fallthru
      _
    // Predicated region
    $region22: #{tpu_custom_call.1} parent=1 // pred_check
      _
    $region23: #{tpu_custom_call.1} parent=1 // pred_check_branch
      %61 = sbr.rel (0) target = $region25
    $region24: #{tpu_custom_call.1} parent=1 // pred_region
      %s63 = ssub.s32 28672, 28672
      %64 = vsyncadd [#allocation9], %s63
      %s65 = sshll.u32 [#allocation10], 4
      %s66 = int_to_ptr.vmem [resolvable:$true] %s65
      %71 = dma.hbm_to_vmem [thread:$0]  %s5, 28672, %s66, [#allocation9], 896, 896, 56
    $region25: #{tpu_custom_call.1} parent=1 // pred_fallthru
      _
    // Predicated region
    $region26: #{tpu_custom_call.1} parent=1 // pred_check
      _
    $region27: #{tpu_custom_call.1} parent=1 // pred_check_branch
      %73 = sbr.rel (0) target = $region29
    $region28: #{tpu_custom_call.1} parent=1 // pred_region
      _
    $region29: #{tpu_custom_call.1} parent=1 // pred_fallthru
      _
    // Predicated region
    $region30: #{tpu_custom_call.1} parent=1 // pred_check
      _
    $region31: #{tpu_custom_call.1} parent=1 // pred_check_branch
      %75 = sbr.rel (0) target = $region33
    $region32: #{tpu_custom_call.1} parent=1 // pred_region
      %76 = dma.done [#allocation3], 128
    $region33: #{tpu_custom_call.1} parent=1 // pred_fallthru
      _
    // Predicated region
    $region34: #{tpu_custom_call.1} parent=1 // pred_check
      _
    $region35: #{tpu_custom_call.1} parent=1 // pred_check_branch
      %78 = sbr.rel (0) target = $region37
    $region36: #{tpu_custom_call.1} parent=1 // pred_region
      %79 = dma.done [#allocation6], 4096
    $region37: #{tpu_custom_call.1} parent=1 // pred_fallthru
      _
    // Predicated region
    $region38: #{tpu_custom_call.1} parent=1 // pred_check
      _
    $region39: #{tpu_custom_call.1} parent=1 // pred_check_branch
      %81 = sbr.rel (0) target = $region41
    $region40: #{tpu_custom_call.1} parent=1 // pred_region
      %82 = dma.done [#allocation6], 32
    $region41: #{tpu_custom_call.1} parent=1 // pred_fallthru
      _
    // Predicated region
    $region42: #{tpu_custom_call.1} parent=1 // pred_check
      _
    $region43: #{tpu_custom_call.1} parent=1 // pred_check_branch
      %84 = sbr.rel (0) target = $region45
    $region44: #{tpu_custom_call.1} parent=1 // pred_region
      %85 = dma.done [#allocation9], 32
    $region45: #{tpu_custom_call.1} parent=1 // pred_fallthru
      _
    // Predicated region
    $region46: #{tpu_custom_call.1} parent=1 // pred_check
      _
    $region47: #{tpu_custom_call.1} parent=1 // pred_check_branch
      %87 = sbr.rel (0) target = $region49
    $region48: #{tpu_custom_call.1} parent=1 // pred_region
      %88 = dma.done [#allocation9], 28672
    $region49: #{tpu_custom_call.1} parent=1 // pred_fallthru
      _
    %v89 = vld [vmem:[#allocation2] sm:$0xff]
    %v90 = vld [vmem:[#allocation5] sm:$0xff]
    %v91 = vld [vmem:[#allocation5 + $0x8] sm:$0xff]
    %v92 = vld [vmem:[#allocation5 + $0x10] sm:$0xff]
    %v93 = vld [vmem:[#allocation5 + $0x18] sm:$0xff]
    %v94 = vld [vmem:[#allocation5 + $0x20] sm:$0xff]
    %v95 = vld [vmem:[#allocation5 + $0x28] sm:$0xff]
    %v96 = vld [vmem:[#allocation5 + $0x30] sm:$0xff]
    %v97 = vld [vmem:[#allocation5 + $0x38] sm:$0xff]
    %v98 = vld [vmem:[#allocation5 + $0x40] sm:$0xff]
    %v99 = vld [vmem:[#allocation5 + $0x48] sm:$0xff]
    %v100 = vld [vmem:[#allocation5 + $0x50] sm:$0xff]
    %v101 = vld [vmem:[#allocation5 + $0x58] sm:$0xff]
    %v102 = vld [vmem:[#allocation5 + $0x60] sm:$0xff]
    %v103 = vld [vmem:[#allocation5 + $0x68] sm:$0xff]
    %v104 = vld [vmem:[#allocation5 + $0x70] sm:$0xff]
    %v105 = vld [vmem:[#allocation5 + $0x78] sm:$0xff]
    %v106 = vld [vmem:[#allocation5 + $0x80] sm:$0xff]
    %v107 = vld [vmem:[#allocation5 + $0x88] sm:$0xff]
    %v108 = vld [vmem:[#allocation5 + $0x90] sm:$0xff]
    %v109 = vld [vmem:[#allocation5 + $0x98] sm:$0xff]
    %v110 = vld [vmem:[#allocation5 + $0xa0] sm:$0xff]
    %v111 = vld [vmem:[#allocation5 + $0xa8] sm:$0xff]
    %v112 = vld [vmem:[#allocation5 + $0xb0] sm:$0xff]
    %v113 = vld [vmem:[#allocation5 + $0xb8] sm:$0xff]
    %v114 = vld [vmem:[#allocation5 + $0xc0] sm:$0xff]
    %v115 = vld [vmem:[#allocation5 + $0xc8] sm:$0xff]
    %v116 = vld [vmem:[#allocation5 + $0xd0] sm:$0xff]
    %v117 = vld [vmem:[#allocation5 + $0xd8] sm:$0xff]
    %v118 = vld [vmem:[#allocation5 + $0xe0] sm:$0xff]
    %v119 = vld [vmem:[#allocation5 + $0xe8] sm:$0xff]
    %v120 = vld [vmem:[#allocation5 + $0xf0] sm:$0xff]
    %v121 = vld [vmem:[#allocation5 + $0xf8] sm:$0xff]
    %v122 = vld [vmem:[%s2] sm:$0x3]
    %v124 = vlaneseq
    %v125 = vshrl.u32 %v124, 7
    %v126 = vsub.s32 0, %v125
    %v127 = vrot.slane %v122, %v126
    %v128 = vlaneseq
    %v129 = vshrl.u32 %v128, 7
    %v130 = vsub.s32 1, %v129
    %v131 = vrot.slane %v122, %v130
    %134 = vmatprep.subr.mxu0 %v121
    %135 = vmatpush1.msra.mxu0 %v120
    %136 = vmatprep.subr.mxu0 %v119
    %137 = vmatpush1.msra.mxu0 %v118
    %138 = vmatprep.subr.mxu0 %v117
    %139 = vmatpush1.msra.mxu0 %v116
    %140 = vmatprep.subr.mxu0 %v115
    %141 = vmatpush1.msra.mxu0 %v114
    %142 = vmatprep.subr.mxu0 %v113
    %143 = vmatpush1.msra.mxu0 %v112
    %144 = vmatprep.subr.mxu0 %v111
    %145 = vmatpush1.msra.mxu0 %v110
    %146 = vmatprep.subr.mxu0 %v109
    %147 = vmatpush1.msra.mxu0 %v108
    %148 = vmatprep.subr.mxu0 %v107
    %149 = vmatpush1.msra.mxu0 %v106
    %150 = vmatprep.subr.mxu0 %v105
    %151 = vmatpush1.msra.mxu0 %v104
    %152 = vmatprep.subr.mxu0 %v103
    %153 = vmatpush1.msra.mxu0 %v102
    %154 = vmatprep.subr.mxu0 %v101
    %155 = vmatpush1.msra.mxu0 %v100
    %156 = vmatprep.subr.mxu0 %v99
    %157 = vmatpush1.msra.mxu0 %v98
    %158 = vmatprep.subr.mxu0 %v97
    %159 = vmatpush1.msra.mxu0 %v96
    %160 = vmatprep.subr.mxu0 %v95
    %161 = vmatpush1.msra.mxu0 %v94
    %162 = vmatprep.subr.mxu0 %v93
    %163 = vmatpush1.msra.mxu0 %v92
    %164 = vmatprep.subr.mxu0 %v91
    %165 = vmatpush1.msra.mxu0 %v90
    %166 = vmatprep.subr.mxu0 0.0
    %167 = vmatpush2.msra.mxu0 0.0
    %168 = vmatprep.subr.mxu0 0.0
    %169 = vmatpush2.msra.mxu0 0.0
    %170 = vmatprep.subr.mxu0 0.0
    %171 = vmatpush2.msra.mxu0 0.0
    %172 = vmatprep.subr.mxu0 0.0
    %173 = vmatpush2.msra.mxu0 0.0
    %174 = vmatprep.subr.mxu0 0.0
    %175 = vmatpush2.msra.mxu0 0.0
    %176 = vmatprep.subr.mxu0 0.0
    %177 = vmatpush2.msra.mxu0 0.0
    %178 = vmatprep.subr.mxu0 0.0
    %179 = vmatpush2.msra.mxu0 0.0
    %180 = vmatprep.subr.mxu0 0.0
    %181 = vmatpush2.msra.mxu0 0.0
    %182 = vmatprep.subr.mxu0 0.0
    %183 = vmatpush2.msra.mxu0 0.0
    %184 = vmatprep.subr.mxu0 0.0
    %185 = vmatpush2.msra.mxu0 0.0
    %186 = vmatprep.subr.mxu0 0.0
    %187 = vmatpush2.msra.mxu0 0.0
    %188 = vmatprep.subr.mxu0 0.0
    %189 = vmatpush2.msra.mxu0 0.0
    %190 = vmatprep.subr.mxu0 0.0
    %191 = vmatpush2.msra.mxu0 0.0
    %192 = vmatprep.subr.mxu0 0.0
    %193 = vmatpush2.msra.mxu0 0.0
    %194 = vmatprep.subr.mxu0 0.0
    %195 = vmatpush2.msra.mxu0 0.0
    %196 = vmatprep.subr.mxu0 0.0
    %197 = vmatpush2.msra.mxu0 0.0
    %198 = vmatprep.mubr.f32.mxu0 0.0
    %199 = vmatmul.mubr.f32.gmra.mxu0 %v89
    %v200 = vpop.f32.mrf.mxu0
    %v201 = vadd.f32 %v127, %v200
    %v202 = vpop.f32.mrf.mxu0
    %v203 = vadd.f32 %v131, %v202
    %204 = vdwg.mxu0
    %v205 = vadd.f32 %v201, %v203
    %206 = vadd.xlane.f32.xlu0 %v205
    %v207 = vpop.xlane.xlu0 %206
    %v208 = vmul.f32 %v207, 0.005
    %v209 = vlaneseq
    %v210 = vand.u32 %v209, 127
    %v211 = vadd.s32 %v210, 128
    %vm212 = vcmp.lt.s32.totalorder %v210, 200
    %vm213 = vcmp.lt.s32.totalorder %v211, 200
    %v214 = vsel %vm212, 1, 0
    %v215 = vsel %vm213, 1, 0
    %v216 = vcvt.s32.f32 %v214
    %v217 = vcvt.s32.f32 %v215
    %v218 = vsub.f32 %v201, %v208
    %v219 = vsub.f32 %v203, %v208
    %v220 = vmul.f32 %v218, %v216
    %v221 = vmul.f32 %v219, %v217
    %v222 = vmul.f32 %v220, %v220
    %v223 = vmul.f32 %v221, %v221
    %v224 = vadd.f32 %v222, %v223
    %225 = vadd.xlane.f32.xlu0 %v224
    %v226 = vpop.xlane.xlu0 %225
    %v227 = vmul.f32 %v226, 0.005
    %v228 = vadd.f32 %v227, 1e-05
    %v229 = vrsqrt.pop %v228
    %v230 = vmul.f32 %v218, %v229
    %v231 = vmul.f32 %v219, %v229
    %v232 = vld [vmem:[#allocation7] sm:$0x3]
    %v234 = vlaneseq
    %v235 = vshrl.u32 %v234, 7
    %v236 = vsub.s32 0, %v235
    %v237 = vrot.slane %v232, %v236
    %v238 = vlaneseq
    %v239 = vshrl.u32 %v238, 7
    %v240 = vsub.s32 1, %v239
    %v241 = vrot.slane %v232, %v240
    %v244 = vmul.f32 %v230, %v237
    %v245 = vmul.f32 %v231, %v241
    %v246 = vld [vmem:[#allocation8] sm:$0x3]
    %v248 = vlaneseq
    %v249 = vshrl.u32 %v248, 7
    %v250 = vsub.s32 0, %v249
    %v251 = vrot.slane %v246, %v250
    %v252 = vlaneseq
    %v253 = vshrl.u32 %v252, 7
    %v254 = vsub.s32 1, %v253
    %v255 = vrot.slane %v246, %v254
    %v258 = vadd.f32 %v244, %v251
    %v259 = vadd.f32 %v245, %v255
    %vm260 = vcmp.ge.f32.partialorder %v258, 0.0
    %vm261 = vcmp.ge.f32.partialorder %v259, 0.0
    %v262 = vmul.f32 %v258, 0.02
    %v263 = vmul.f32 %v259, 0.02
    %v264 = vsel %vm260, %v258, %v262
    %v265 = vsel %vm261, %v259, %v263
    %v266 = vld [vmem:[#allocation10] sm:$0xff]
    %v267 = vld [vmem:[#allocation10 + $0x8] sm:$0xff]
    %v268 = vld [vmem:[#allocation10 + $0x10] sm:$0xff]
    %v269 = vld [vmem:[#allocation10 + $0x18] sm:$0xff]
    %v270 = vld [vmem:[#allocation10 + $0x20] sm:$0xff]
    %v271 = vld [vmem:[#allocation10 + $0x28] sm:$0xff]
    %v272 = vld [vmem:[#allocation10 + $0x30] sm:$0xff]
    %v273 = vld [vmem:[#allocation10 + $0x38] sm:$0xff]
    %v274 = vld [vmem:[#allocation10 + $0x40] sm:$0xff]
    %v275 = vld [vmem:[#allocation10 + $0x48] sm:$0xff]
    %v276 = vld [vmem:[#allocation10 + $0x50] sm:$0xff]
    %v277 = vld [vmem:[#allocation10 + $0x58] sm:$0xff]
    %v278 = vld [vmem:[#allocation10 + $0x60] sm:$0xff]
    %v279 = vld [vmem:[#allocation10 + $0x68] sm:$0xff]
    %v280 = vld [vmem:[#allocation10 + $0x70] sm:$0xff]
    %v281 = vld [vmem:[#allocation10 + $0x78] sm:$0xff]
    %v282 = vld [vmem:[#allocation10 + $0x80] sm:$0xff]
    %v283 = vld [vmem:[#allocation10 + $0x88] sm:$0xff]
    %v284 = vld [vmem:[#allocation10 + $0x90] sm:$0xff]
    %v285 = vld [vmem:[#allocation10 + $0x98] sm:$0xff]
    %v286 = vld [vmem:[#allocation10 + $0xa0] sm:$0xff]
    %v287 = vld [vmem:[#allocation10 + $0xa8] sm:$0xff]
    %v288 = vld [vmem:[#allocation10 + $0xb0] sm:$0xff]
    %v289 = vld [vmem:[#allocation10 + $0xb8] sm:$0xff]
    %v290 = vld [vmem:[#allocation10 + $0xc0] sm:$0xff]
    %v291 = vld [vmem:[#allocation10 + $0xc8] sm:$0xff]
    %v292 = vld [vmem:[#allocation10 + $0xd0] sm:$0xff]
    %v293 = vld [vmem:[#allocation10 + $0xd8] sm:$0xff]
    %v294 = vld [vmem:[#allocation10 + $0xe0] sm:$0xff]
    %v295 = vld [vmem:[#allocation10 + $0xe8] sm:$0xff]
    %v296 = vld [vmem:[#allocation10 + $0xf0] sm:$0xff]
    %v297 = vld [vmem:[#allocation10 + $0xf8] sm:$0xff]
    %v298 = vld [vmem:[#allocation10 + $0x100] sm:$0xff]
    %v299 = vld [vmem:[#allocation10 + $0x108] sm:$0xff]
    %v300 = vld [vmem:[#allocation10 + $0x110] sm:$0xff]
    %v301 = vld [vmem:[#allocation10 + $0x118] sm:$0xff]
    %v302 = vld [vmem:[#allocation10 + $0x120] sm:$0xff]
    %v303 = vld [vmem:[#allocation10 + $0x128] sm:$0xff]
    %v304 = vld [vmem:[#allocation10 + $0x130] sm:$0xff]
    %v305 = vld [vmem:[#allocation10 + $0x138] sm:$0xff]
    %v306 = vld [vmem:[#allocation10 + $0x140] sm:$0xff]
    %v307 = vld [vmem:[#allocation10 + $0x148] sm:$0xff]
    %v308 = vld [vmem:[#allocation10 + $0x150] sm:$0xff]
    %v309 = vld [vmem:[#allocation10 + $0x158] sm:$0xff]
    %v310 = vld [vmem:[#allocation10 + $0x160] sm:$0xff]
    %v311 = vld [vmem:[#allocation10 + $0x168] sm:$0xff]
    %v312 = vld [vmem:[#allocation10 + $0x170] sm:$0xff]
    %v313 = vld [vmem:[#allocation10 + $0x178] sm:$0xff]
    %v314 = vld [vmem:[#allocation10 + $0x180] sm:$0xff]
    %v315 = vld [vmem:[#allocation10 + $0x188] sm:$0xff]
    %v316 = vld [vmem:[#allocation10 + $0x190] sm:$0xff]
    %v317 = vld [vmem:[#allocation10 + $0x198] sm:$0xff]
    %v318 = vld [vmem:[#allocation10 + $0x1a0] sm:$0xff]
    %v319 = vld [vmem:[#allocation10 + $0x1a8] sm:$0xff]
    %v320 = vld [vmem:[#allocation10 + $0x1b0] sm:$0xff]
    %v321 = vld [vmem:[#allocation10 + $0x1b8] sm:$0xff]
    %v322 = vld [vmem:[#allocation10 + $0x1c0] sm:$0xff]
    %v323 = vld [vmem:[#allocation10 + $0x1c8] sm:$0xff]
    %v324 = vld [vmem:[#allocation10 + $0x1d0] sm:$0xff]
    %v325 = vld [vmem:[#allocation10 + $0x1d8] sm:$0xff]
    %v326 = vld [vmem:[#allocation10 + $0x1e0] sm:$0xff]
    %v327 = vld [vmem:[#allocation10 + $0x1e8] sm:$0xff]
    %v328 = vld [vmem:[#allocation10 + $0x1f0] sm:$0xff]
    %v329 = vld [vmem:[#allocation10 + $0x1f8] sm:$0xff]
    %v330 = vld [vmem:[#allocation10 + $0x200] sm:$0xff]
    %v331 = vld [vmem:[#allocation10 + $0x208] sm:$0xff]
    %v332 = vld [vmem:[#allocation10 + $0x210] sm:$0xff]
    %v333 = vld [vmem:[#allocation10 + $0x218] sm:$0xff]
    %v334 = vld [vmem:[#allocation10 + $0x220] sm:$0xff]
    %v335 = vld [vmem:[#allocation10 + $0x228] sm:$0xff]
    %v336 = vld [vmem:[#allocation10 + $0x230] sm:$0xff]
    %v337 = vld [vmem:[#allocation10 + $0x238] sm:$0xff]
    %v338 = vld [vmem:[#allocation10 + $0x240] sm:$0xff]
    %v339 = vld [vmem:[#allocation10 + $0x248] sm:$0xff]
    %v340 = vld [vmem:[#allocation10 + $0x250] sm:$0xff]
    %v341 = vld [vmem:[#allocation10 + $0x258] sm:$0xff]
    %v342 = vld [vmem:[#allocation10 + $0x260] sm:$0xff]
    %v343 = vld [vmem:[#allocation10 + $0x268] sm:$0xff]
    %v344 = vld [vmem:[#allocation10 + $0x270] sm:$0xff]
    %v345 = vld [vmem:[#allocation10 + $0x278] sm:$0xff]
    %v346 = vld [vmem:[#allocation10 + $0x280] sm:$0xff]
    %v347 = vld [vmem:[#allocation10 + $0x288] sm:$0xff]
    %v348 = vld [vmem:[#allocation10 + $0x290] sm:$0xff]
    %v349 = vld [vmem:[#allocation10 + $0x298] sm:$0xff]
    %v350 = vld [vmem:[#allocation10 + $0x2a0] sm:$0xff]
    %v351 = vld [vmem:[#allocation10 + $0x2a8] sm:$0xff]
    %v352 = vld [vmem:[#allocation10 + $0x2b0] sm:$0xff]
    %v353 = vld [vmem:[#allocation10 + $0x2b8] sm:$0xff]
    %v354 = vld [vmem:[#allocation10 + $0x2c0] sm:$0xff]
    %v355 = vld [vmem:[#allocation10 + $0x2c8] sm:$0xff]
    %v356 = vld [vmem:[#allocation10 + $0x2d0] sm:$0xff]
    %v357 = vld [vmem:[#allocation10 + $0x2d8] sm:$0xff]
    %v358 = vld [vmem:[#allocation10 + $0x2e0] sm:$0xff]
    %v359 = vld [vmem:[#allocation10 + $0x2e8] sm:$0xff]
    %v360 = vld [vmem:[#allocation10 + $0x2f0] sm:$0xff]
    %v361 = vld [vmem:[#allocation10 + $0x2f8] sm:$0xff]
    %v362 = vld [vmem:[#allocation10 + $0x300] sm:$0xff]
    %v363 = vld [vmem:[#allocation10 + $0x308] sm:$0xff]
    %v364 = vld [vmem:[#allocation10 + $0x310] sm:$0xff]
    %v365 = vld [vmem:[#allocation10 + $0x318] sm:$0xff]
    %v366 = vld [vmem:[#allocation10 + $0x320] sm:$0xff]
    %v367 = vld [vmem:[#allocation10 + $0x328] sm:$0xff]
    %v368 = vld [vmem:[#allocation10 + $0x330] sm:$0xff]
    %v369 = vld [vmem:[#allocation10 + $0x338] sm:$0xff]
    %v370 = vld [vmem:[#allocation10 + $0x340] sm:$0xff]
    %v371 = vld [vmem:[#allocation10 + $0x348] sm:$0xff]
    %v372 = vld [vmem:[#allocation10 + $0x350] sm:$0xff]
    %v373 = vld [vmem:[#allocation10 + $0x358] sm:$0xff]
    %v374 = vld [vmem:[#allocation10 + $0x360] sm:$0xff]
    %v375 = vld [vmem:[#allocation10 + $0x368] sm:$0xff]
    %v376 = vld [vmem:[#allocation10 + $0x370] sm:$0xff]
    %v377 = vld [vmem:[#allocation10 + $0x378] sm:$0xff]
    %v378 = vld [vmem:[#allocation10 + $0x380] sm:$0xff]
    %v379 = vld [vmem:[#allocation10 + $0x388] sm:$0xff]
    %v380 = vld [vmem:[#allocation10 + $0x390] sm:$0xff]
    %v381 = vld [vmem:[#allocation10 + $0x398] sm:$0xff]
    %v382 = vld [vmem:[#allocation10 + $0x3a0] sm:$0xff]
    %v383 = vld [vmem:[#allocation10 + $0x3a8] sm:$0xff]
    %v384 = vld [vmem:[#allocation10 + $0x3b0] sm:$0xff]
    %v385 = vld [vmem:[#allocation10 + $0x3b8] sm:$0xff]
    %v386 = vld [vmem:[#allocation10 + $0x3c0] sm:$0xff]
    %v387 = vld [vmem:[#allocation10 + $0x3c8] sm:$0xff]
    %v388 = vld [vmem:[#allocation10 + $0x3d0] sm:$0xff]
    %v389 = vld [vmem:[#allocation10 + $0x3d8] sm:$0xff]
    %v390 = vld [vmem:[#allocation10 + $0x3e0] sm:$0xff]
    %v391 = vld [vmem:[#allocation10 + $0x3e8] sm:$0xff]
    %v392 = vld [vmem:[#allocation10 + $0x3f0] sm:$0xff]
    %v393 = vld [vmem:[#allocation10 + $0x3f8] sm:$0xff]
    %v394 = vld [vmem:[#allocation10 + $0x400] sm:$0xff]
    %v395 = vld [vmem:[#allocation10 + $0x408] sm:$0xff]
    %v396 = vld [vmem:[#allocation10 + $0x410] sm:$0xff]
    %v397 = vld [vmem:[#allocation10 + $0x418] sm:$0xff]
    %v398 = vld [vmem:[#allocation10 + $0x420] sm:$0xff]
    %v399 = vld [vmem:[#allocation10 + $0x428] sm:$0xff]
    %v400 = vld [vmem:[#allocation10 + $0x430] sm:$0xff]
    %v401 = vld [vmem:[#allocation10 + $0x438] sm:$0xff]
    %v402 = vld [vmem:[#allocation10 + $0x440] sm:$0xff]
    %v403 = vld [vmem:[#allocation10 + $0x448] sm:$0xff]
    %v404 = vld [vmem:[#allocation10 + $0x450] sm:$0xff]
    %v405 = vld [vmem:[#allocation10 + $0x458] sm:$0xff]
    %v406 = vld [vmem:[#allocation10 + $0x460] sm:$0xff]
    %v407 = vld [vmem:[#allocation10 + $0x468] sm:$0xff]
    %v408 = vld [vmem:[#allocation10 + $0x470] sm:$0xff]
    %v409 = vld [vmem:[#allocation10 + $0x478] sm:$0xff]
    %v410 = vld [vmem:[#allocation10 + $0x480] sm:$0xff]
    %v411 = vld [vmem:[#allocation10 + $0x488] sm:$0xff]
    %v412 = vld [vmem:[#allocation10 + $0x490] sm:$0xff]
    %v413 = vld [vmem:[#allocation10 + $0x498] sm:$0xff]
    %v414 = vld [vmem:[#allocation10 + $0x4a0] sm:$0xff]
    %v415 = vld [vmem:[#allocation10 + $0x4a8] sm:$0xff]
    %v416 = vld [vmem:[#allocation10 + $0x4b0] sm:$0xff]
    %v417 = vld [vmem:[#allocation10 + $0x4b8] sm:$0xff]
    %v418 = vld [vmem:[#allocation10 + $0x4c0] sm:$0xff]
    %v419 = vld [vmem:[#allocation10 + $0x4c8] sm:$0xff]
    %v420 = vld [vmem:[#allocation10 + $0x4d0] sm:$0xff]
    %v421 = vld [vmem:[#allocation10 + $0x4d8] sm:$0xff]
    %v422 = vld [vmem:[#allocation10 + $0x4e0] sm:$0xff]
    %v423 = vld [vmem:[#allocation10 + $0x4e8] sm:$0xff]
    %v424 = vld [vmem:[#allocation10 + $0x4f0] sm:$0xff]
    %v425 = vld [vmem:[#allocation10 + $0x4f8] sm:$0xff]
    %v426 = vld [vmem:[#allocation10 + $0x500] sm:$0xff]
    %v427 = vld [vmem:[#allocation10 + $0x508] sm:$0xff]
    %v428 = vld [vmem:[#allocation10 + $0x510] sm:$0xff]
    %v429 = vld [vmem:[#allocation10 + $0x518] sm:$0xff]
    %v430 = vld [vmem:[#allocation10 + $0x520] sm:$0xff]
    %v431 = vld [vmem:[#allocation10 + $0x528] sm:$0xff]
    %v432 = vld [vmem:[#allocation10 + $0x530] sm:$0xff]
    %v433 = vld [vmem:[#allocation10 + $0x538] sm:$0xff]
    %v434 = vld [vmem:[#allocation10 + $0x540] sm:$0xff]
    %v435 = vld [vmem:[#allocation10 + $0x548] sm:$0xff]
    %v436 = vld [vmem:[#allocation10 + $0x550] sm:$0xff]
    %v437 = vld [vmem:[#allocation10 + $0x558] sm:$0xff]
    %v438 = vld [vmem:[#allocation10 + $0x560] sm:$0xff]
    %v439 = vld [vmem:[#allocation10 + $0x568] sm:$0xff]
    %v440 = vld [vmem:[#allocation10 + $0x570] sm:$0xff]
    %v441 = vld [vmem:[#allocation10 + $0x578] sm:$0xff]
    %v442 = vld [vmem:[#allocation10 + $0x580] sm:$0xff]
    %v443 = vld [vmem:[#allocation10 + $0x588] sm:$0xff]
    %v444 = vld [vmem:[#allocation10 + $0x590] sm:$0xff]
    %v445 = vld [vmem:[#allocation10 + $0x598] sm:$0xff]
    %v446 = vld [vmem:[#allocation10 + $0x5a0] sm:$0xff]
    %v447 = vld [vmem:[#allocation10 + $0x5a8] sm:$0xff]
    %v448 = vld [vmem:[#allocation10 + $0x5b0] sm:$0xff]
    %v449 = vld [vmem:[#allocation10 + $0x5b8] sm:$0xff]
    %v450 = vld [vmem:[#allocation10 + $0x5c0] sm:$0xff]
    %v451 = vld [vmem:[#allocation10 + $0x5c8] sm:$0xff]
    %v452 = vld [vmem:[#allocation10 + $0x5d0] sm:$0xff]
    %v453 = vld [vmem:[#allocation10 + $0x5d8] sm:$0xff]
    %v454 = vld [vmem:[#allocation10 + $0x5e0] sm:$0xff]
    %v455 = vld [vmem:[#allocation10 + $0x5e8] sm:$0xff]
    %v456 = vld [vmem:[#allocation10 + $0x5f0] sm:$0xff]
    %v457 = vld [vmem:[#allocation10 + $0x5f8] sm:$0xff]
    %v458 = vld [vmem:[#allocation10 + $0x600] sm:$0xff]
    %v459 = vld [vmem:[#allocation10 + $0x608] sm:$0xff]
    %v460 = vld [vmem:[#allocation10 + $0x610] sm:$0xff]
    %v461 = vld [vmem:[#allocation10 + $0x618] sm:$0xff]
    %v462 = vld [vmem:[#allocation10 + $0x620] sm:$0xff]
    %v463 = vld [vmem:[#allocation10 + $0x628] sm:$0xff]
    %v464 = vld [vmem:[#allocation10 + $0x630] sm:$0xff]
    %v465 = vld [vmem:[#allocation10 + $0x638] sm:$0xff]
    %v466 = vld [vmem:[#allocation10 + $0x640] sm:$0xff]
    %v467 = vld [vmem:[#allocation10 + $0x648] sm:$0xff]
    %v468 = vld [vmem:[#allocation10 + $0x650] sm:$0xff]
    %v469 = vld [vmem:[#allocation10 + $0x658] sm:$0xff]
    %v470 = vld [vmem:[#allocation10 + $0x660] sm:$0xff]
    %v471 = vld [vmem:[#allocation10 + $0x668] sm:$0xff]
    %v472 = vld [vmem:[#allocation10 + $0x670] sm:$0xff]
    %v473 = vld [vmem:[#allocation10 + $0x678] sm:$0xff]
    %v474 = vld [vmem:[#allocation10 + $0x680] sm:$0xff]
    %v475 = vld [vmem:[#allocation10 + $0x688] sm:$0xff]
    %v476 = vld [vmem:[#allocation10 + $0x690] sm:$0xff]
    %v477 = vld [vmem:[#allocation10 + $0x698] sm:$0xff]
    %v478 = vld [vmem:[#allocation10 + $0x6a0] sm:$0xff]
    %v479 = vld [vmem:[#allocation10 + $0x6a8] sm:$0xff]
    %v480 = vld [vmem:[#allocation10 + $0x6b0] sm:$0xff]
    %v481 = vld [vmem:[#allocation10 + $0x6b8] sm:$0xff]
    %v482 = vld [vmem:[#allocation10 + $0x6c0] sm:$0xff]
    %v483 = vld [vmem:[#allocation10 + $0x6c8] sm:$0xff]
    %v484 = vld [vmem:[#allocation10 + $0x6d0] sm:$0xff]
    %v485 = vld [vmem:[#allocation10 + $0x6d8] sm:$0xff]
    %v486 = vld [vmem:[#allocation10 + $0x6e0] sm:$0xff]
    %v487 = vld [vmem:[#allocation10 + $0x6e8] sm:$0xff]
    %v488 = vld [vmem:[#allocation10 + $0x6f0] sm:$0xff]
    %v489 = vld [vmem:[#allocation10 + $0x6f8] sm:$0xff]
    %v490 = vld [vmem:[%s6] sm:$0xff]
    %v492 = vlaneseq
    %v493 = vshrl.u32 %v492, 7
    %v494 = vsub.s32 0, %v493
    %v495 = vrot.slane %v490, %v494
    %v496 = vlaneseq
    %v497 = vshrl.u32 %v496, 7
    %v498 = vsub.s32 1, %v497
    %v499 = vrot.slane %v490, %v498
    %v500 = vlaneseq
    %v501 = vshrl.u32 %v500, 7
    %v502 = vsub.s32 2, %v501
    %v503 = vrot.slane %v490, %v502
    %v504 = vlaneseq
    %v505 = vshrl.u32 %v504, 7
    %v506 = vsub.s32 3, %v505
    %v507 = vrot.slane %v490, %v506
    %v508 = vlaneseq
    %v509 = vshrl.u32 %v508, 7
    %v510 = vsub.s32 4, %v509
    %v511 = vrot.slane %v490, %v510
    %v512 = vlaneseq
    %v513 = vshrl.u32 %v512, 7
    %v514 = vsub.s32 5, %v513
    %v515 = vrot.slane %v490, %v514
    %v516 = vlaneseq
    %v517 = vshrl.u32 %v516, 7
    %v518 = vsub.s32 6, %v517
    %v519 = vrot.slane %v490, %v518
    %527 = vmatprep.subr.mxu0 %v372
    %528 = vmatpush1.msra.mxu0 %v371
    %529 = vmatprep.subr.mxu0 %v365
    %530 = vmatpush1.msra.mxu0 %v364
    %531 = vmatprep.subr.mxu0 %v358
    %532 = vmatpush1.msra.mxu0 %v357
    %533 = vmatprep.subr.mxu0 %v351
    %534 = vmatpush1.msra.mxu0 %v350
    %535 = vmatprep.subr.mxu0 %v344
    %536 = vmatpush1.msra.mxu0 %v343
    %537 = vmatprep.subr.mxu0 %v337
    %538 = vmatpush1.msra.mxu0 %v336
    %539 = vmatprep.subr.mxu0 %v330
    %540 = vmatpush1.msra.mxu0 %v329
    %541 = vmatprep.subr.mxu0 %v323
    %542 = vmatpush1.msra.mxu0 %v322
    %543 = vmatprep.subr.mxu0 %v316
    %544 = vmatpush1.msra.mxu0 %v315
    %545 = vmatprep.subr.mxu0 %v309
    %546 = vmatpush1.msra.mxu0 %v308
    %547 = vmatprep.subr.mxu0 %v302
    %548 = vmatpush1.msra.mxu0 %v301
    %549 = vmatprep.subr.mxu0 %v295
    %550 = vmatpush1.msra.mxu0 %v294
    %551 = vmatprep.subr.mxu0 %v288
    %552 = vmatpush1.msra.mxu0 %v287
    %553 = vmatprep.subr.mxu0 %v281
    %554 = vmatpush1.msra.mxu0 %v280
    %555 = vmatprep.subr.mxu0 %v274
    %556 = vmatpush1.msra.mxu0 %v273
    %557 = vmatprep.subr.mxu0 %v267
    %558 = vmatpush1.msra.mxu0 %v266
    %559 = vmatprep.subr.mxu0 %v484
    %560 = vmatpush2.msra.mxu0 %v483
    %561 = vmatprep.subr.mxu0 %v477
    %562 = vmatpush2.msra.mxu0 %v476
    %563 = vmatprep.subr.mxu0 %v470
    %564 = vmatpush2.msra.mxu0 %v469
    %565 = vmatprep.subr.mxu0 %v463
    %566 = vmatpush2.msra.mxu0 %v462
    %567 = vmatprep.subr.mxu0 %v456
    %568 = vmatpush2.msra.mxu0 %v455
    %569 = vmatprep.subr.mxu0 %v449
    %570 = vmatpush2.msra.mxu0 %v448
    %571 = vmatprep.subr.mxu0 %v442
    %572 = vmatpush2.msra.mxu0 %v441
    %573 = vmatprep.subr.mxu0 %v435
    %574 = vmatpush2.msra.mxu0 %v434
    %575 = vmatprep.subr.mxu0 %v428
    %576 = vmatpush2.msra.mxu0 %v427
    %577 = vmatprep.subr.mxu0 %v421
    %578 = vmatpush2.msra.mxu0 %v420
    %579 = vmatprep.subr.mxu0 %v414
    %580 = vmatpush2.msra.mxu0 %v413
    %581 = vmatprep.subr.mxu0 %v407
    %582 = vmatpush2.msra.mxu0 %v406
    %583 = vmatprep.subr.mxu0 %v400
    %584 = vmatpush2.msra.mxu0 %v399
    %585 = vmatprep.subr.mxu0 %v393
    %586 = vmatpush2.msra.mxu0 %v392
    %587 = vmatprep.subr.mxu0 %v386
    %588 = vmatpush2.msra.mxu0 %v385
    %589 = vmatprep.subr.mxu0 %v379
    %590 = vmatpush2.msra.mxu0 %v378
    %591 = vmatprep.mubr.f32.mxu0 %v265
    %592 = vmatmul.mubr.f32.gmra.mxu0 %v264
    %v593 = vpop.f32.mrf.mxu0
    %v594 = vadd.f32 %v495, %v593
    %v595 = vpop.f32.mrf.mxu0
    %v596 = vadd.f32 %v499, %v595
    %597 = vdwg.mxu0
    %598 = vmatprep.subr.mxu0 %v374
    %599 = vmatpush1.msra.mxu0 %v373
    %600 = vmatprep.subr.mxu0 %v367
    %601 = vmatpush1.msra.mxu0 %v366
    %602 = vmatprep.subr.mxu0 %v360
    %603 = vmatpush1.msra.mxu0 %v359
    %604 = vmatprep.subr.mxu0 %v353
    %605 = vmatpush1.msra.mxu0 %v352
    %606 = vmatprep.subr.mxu0 %v346
    %607 = vmatpush1.msra.mxu0 %v345
    %608 = vmatprep.subr.mxu0 %v339
    %609 = vmatpush1.msra.mxu0 %v338
    %610 = vmatprep.subr.mxu0 %v332
    %611 = vmatpush1.msra.mxu0 %v331
    %612 = vmatprep.subr.mxu0 %v325
    %613 = vmatpush1.msra.mxu0 %v324
    %614 = vmatprep.subr.mxu0 %v318
    %615 = vmatpush1.msra.mxu0 %v317
    %616 = vmatprep.subr.mxu0 %v311
    %617 = vmatpush1.msra.mxu0 %v310
    %618 = vmatprep.subr.mxu0 %v304
    %619 = vmatpush1.msra.mxu0 %v303
    %620 = vmatprep.subr.mxu0 %v297
    %621 = vmatpush1.msra.mxu0 %v296
    %622 = vmatprep.subr.mxu0 %v290
    %623 = vmatpush1.msra.mxu0 %v289
    %624 = vmatprep.subr.mxu0 %v283
    %625 = vmatpush1.msra.mxu0 %v282
    %626 = vmatprep.subr.mxu0 %v276
    %627 = vmatpush1.msra.mxu0 %v275
    %628 = vmatprep.subr.mxu0 %v269
    %629 = vmatpush1.msra.mxu0 %v268
    %630 = vmatprep.subr.mxu0 %v486
    %631 = vmatpush2.msra.mxu0 %v485
    %632 = vmatprep.subr.mxu0 %v479
    %633 = vmatpush2.msra.mxu0 %v478
    %634 = vmatprep.subr.mxu0 %v472
    %635 = vmatpush2.msra.mxu0 %v471
    %636 = vmatprep.subr.mxu0 %v465
    %637 = vmatpush2.msra.mxu0 %v464
    %638 = vmatprep.subr.mxu0 %v458
    %639 = vmatpush2.msra.mxu0 %v457
    %640 = vmatprep.subr.mxu0 %v451
    %641 = vmatpush2.msra.mxu0 %v450
    %642 = vmatprep.subr.mxu0 %v444
    %643 = vmatpush2.msra.mxu0 %v443
    %644 = vmatprep.subr.mxu0 %v437
    %645 = vmatpush2.msra.mxu0 %v436
    %646 = vmatprep.subr.mxu0 %v430
    %647 = vmatpush2.msra.mxu0 %v429
    %648 = vmatprep.subr.mxu0 %v423
    %649 = vmatpush2.msra.mxu0 %v422
    %650 = vmatprep.subr.mxu0 %v416
    %651 = vmatpush2.msra.mxu0 %v415
    %652 = vmatprep.subr.mxu0 %v409
    %653 = vmatpush2.msra.mxu0 %v408
    %654 = vmatprep.subr.mxu0 %v402
    %655 = vmatpush2.msra.mxu0 %v401
    %656 = vmatprep.subr.mxu0 %v395
    %657 = vmatpush2.msra.mxu0 %v394
    %658 = vmatprep.subr.mxu0 %v388
    %659 = vmatpush2.msra.mxu0 %v387
    %660 = vmatprep.subr.mxu0 %v381
    %661 = vmatpush2.msra.mxu0 %v380
    %662 = vmatprep.mubr.f32.mxu0 %v265
    %663 = vmatmul.mubr.f32.gmra.mxu0 %v264
    %v664 = vpop.f32.mrf.mxu0
    %v665 = vadd.f32 %v503, %v664
    %v666 = vpop.f32.mrf.mxu0
    %v667 = vadd.f32 %v507, %v666
    %668 = vdwg.mxu0
    %669 = vmatprep.subr.mxu0 %v376
    %670 = vmatpush1.msra.mxu0 %v375
    %671 = vmatprep.subr.mxu0 %v369
    %672 = vmatpush1.msra.mxu0 %v368
    %673 = vmatprep.subr.mxu0 %v362
    %674 = vmatpush1.msra.mxu0 %v361
    %675 = vmatprep.subr.mxu0 %v355
    %676 = vmatpush1.msra.mxu0 %v354
    %677 = vmatprep.subr.mxu0 %v348
    %678 = vmatpush1.msra.mxu0 %v347
    %679 = vmatprep.subr.mxu0 %v341
    %680 = vmatpush1.msra.mxu0 %v340
    %681 = vmatprep.subr.mxu0 %v334
    %682 = vmatpush1.msra.mxu0 %v333
    %683 = vmatprep.subr.mxu0 %v327
    %684 = vmatpush1.msra.mxu0 %v326
    %685 = vmatprep.subr.mxu0 %v320
    %686 = vmatpush1.msra.mxu0 %v319
    %687 = vmatprep.subr.mxu0 %v313
    %688 = vmatpush1.msra.mxu0 %v312
    %689 = vmatprep.subr.mxu0 %v306
    %690 = vmatpush1.msra.mxu0 %v305
    %691 = vmatprep.subr.mxu0 %v299
    %692 = vmatpush1.msra.mxu0 %v298
    %693 = vmatprep.subr.mxu0 %v292
    %694 = vmatpush1.msra.mxu0 %v291
    %695 = vmatprep.subr.mxu0 %v285
    %696 = vmatpush1.msra.mxu0 %v284
    %697 = vmatprep.subr.mxu0 %v278
    %698 = vmatpush1.msra.mxu0 %v277
    %699 = vmatprep.subr.mxu0 %v271
    %700 = vmatpush1.msra.mxu0 %v270
    %701 = vmatprep.subr.mxu0 %v488
    %702 = vmatpush2.msra.mxu0 %v487
    %703 = vmatprep.subr.mxu0 %v481
    %704 = vmatpush2.msra.mxu0 %v480
    %705 = vmatprep.subr.mxu0 %v474
    %706 = vmatpush2.msra.mxu0 %v473
    %707 = vmatprep.subr.mxu0 %v467
    %708 = vmatpush2.msra.mxu0 %v466
    %709 = vmatprep.subr.mxu0 %v460
    %710 = vmatpush2.msra.mxu0 %v459
    %711 = vmatprep.subr.mxu0 %v453
    %712 = vmatpush2.msra.mxu0 %v452
    %713 = vmatprep.subr.mxu0 %v446
    %714 = vmatpush2.msra.mxu0 %v445
    %715 = vmatprep.subr.mxu0 %v439
    %716 = vmatpush2.msra.mxu0 %v438
    %717 = vmatprep.subr.mxu0 %v432
    %718 = vmatpush2.msra.mxu0 %v431
    %719 = vmatprep.subr.mxu0 %v425
    %720 = vmatpush2.msra.mxu0 %v424
    %721 = vmatprep.subr.mxu0 %v418
    %722 = vmatpush2.msra.mxu0 %v417
    %723 = vmatprep.subr.mxu0 %v411
    %724 = vmatpush2.msra.mxu0 %v410
    %725 = vmatprep.subr.mxu0 %v404
    %726 = vmatpush2.msra.mxu0 %v403
    %727 = vmatprep.subr.mxu0 %v397
    %728 = vmatpush2.msra.mxu0 %v396
    %729 = vmatprep.subr.mxu0 %v390
    %730 = vmatpush2.msra.mxu0 %v389
    %731 = vmatprep.subr.mxu0 %v383
    %732 = vmatpush2.msra.mxu0 %v382
    %733 = vmatprep.mubr.f32.mxu0 %v265
    %734 = vmatmul.mubr.f32.gmra.mxu0 %v264
    %v735 = vpop.f32.mrf.mxu0
    %v736 = vadd.f32 %v511, %v735
    %v737 = vpop.f32.mrf.mxu0
    %v738 = vadd.f32 %v515, %v737
    %739 = vdwg.mxu0
    %740 = vmatprep.subr.mxu0 0.0
    %741 = vmatpush1.msra.mxu0 %v377
    %742 = vmatprep.subr.mxu0 0.0
    %743 = vmatpush1.msra.mxu0 %v370
    %744 = vmatprep.subr.mxu0 0.0
    %745 = vmatpush1.msra.mxu0 %v363
    %746 = vmatprep.subr.mxu0 0.0
    %747 = vmatpush1.msra.mxu0 %v356
    %748 = vmatprep.subr.mxu0 0.0
    %749 = vmatpush1.msra.mxu0 %v349
    %750 = vmatprep.subr.mxu0 0.0
    %751 = vmatpush1.msra.mxu0 %v342
    %752 = vmatprep.subr.mxu0 0.0
    %753 = vmatpush1.msra.mxu0 %v335
    %754 = vmatprep.subr.mxu0 0.0
    %755 = vmatpush1.msra.mxu0 %v328
    %756 = vmatprep.subr.mxu0 0.0
    %757 = vmatpush1.msra.mxu0 %v321
    %758 = vmatprep.subr.mxu0 0.0
    %759 = vmatpush1.msra.mxu0 %v314
    %760 = vmatprep.subr.mxu0 0.0
    %761 = vmatpush1.msra.mxu0 %v307
    %762 = vmatprep.subr.mxu0 0.0
    %763 = vmatpush1.msra.mxu0 %v300
    %764 = vmatprep.subr.mxu0 0.0
    %765 = vmatpush1.msra.mxu0 %v293
    %766 = vmatprep.subr.mxu0 0.0
    %767 = vmatpush1.msra.mxu0 %v286
    %768 = vmatprep.subr.mxu0 0.0
    %769 = vmatpush1.msra.mxu0 %v279
    %770 = vmatprep.subr.mxu0 0.0
    %771 = vmatpush1.msra.mxu0 %v272
    %772 = vmatprep.subr.mxu0 0.0
    %773 = vmatpush2.msra.mxu0 %v489
    %774 = vmatprep.subr.mxu0 0.0
    %775 = vmatpush2.msra.mxu0 %v482
    %776 = vmatprep.subr.mxu0 0.0
    %777 = vmatpush2.msra.mxu0 %v475
    %778 = vmatprep.subr.mxu0 0.0
    %779 = vmatpush2.msra.mxu0 %v468
    %780 = vmatprep.subr.mxu0 0.0
    %781 = vmatpush2.msra.mxu0 %v461
    %782 = vmatprep.subr.mxu0 0.0
    %783 = vmatpush2.msra.mxu0 %v454
    %784 = vmatprep.subr.mxu0 0.0
    %785 = vmatpush2.msra.mxu0 %v447
    %786 = vmatprep.subr.mxu0 0.0
    %787 = vmatpush2.msra.mxu0 %v440
    %788 = vmatprep.subr.mxu0 0.0
    %789 = vmatpush2.msra.mxu0 %v433
    %790 = vmatprep.subr.mxu0 0.0
    %791 = vmatpush2.msra.mxu0 %v426
    %792 = vmatprep.subr.mxu0 0.0
    %793 = vmatpush2.msra.mxu0 %v419
    %794 = vmatprep.subr.mxu0 0.0
    %795 = vmatpush2.msra.mxu0 %v412
    %796 = vmatprep.subr.mxu0 0.0
    %797 = vmatpush2.msra.mxu0 %v405
    %798 = vmatprep.subr.mxu0 0.0
    %799 = vmatpush2.msra.mxu0 %v398
    %800 = vmatprep.subr.mxu0 0.0
    %801 = vmatpush2.msra.mxu0 %v391
    %802 = vmatprep.subr.mxu0 0.0
    %803 = vmatpush2.msra.mxu0 %v384
    %804 = vmatprep.mubr.f32.mxu0 %v265
    %805 = vmatmul.mubr.f32.gmra.mxu0 %v264
    %v806 = vpop.f32.mrf.mxu0
    %v807 = vadd.f32 %v519, %v806
    %v808 = vpop.f32.mrf.mxu0
    %809 = vdwg.mxu0
    %v810 = vmul.f32 %v594, 0.5
    %v811 = vmul.f32 %v596, 0.5
    %v812 = vmul.f32 %v665, 0.5
    %v813 = vmul.f32 %v667, 0.5
    %v814 = vmul.f32 %v736, 0.5
    %v815 = vmul.f32 %v738, 0.5
    %v816 = vmul.f32 %v807, 0.5
    %v817 = vtanh.pop %v810
    %v818 = vtanh.pop %v811
    %v819 = vtanh.pop %v812
    %v820 = vtanh.pop %v813
    %v821 = vtanh.pop %v814
    %v822 = vtanh.pop %v815
    %v823 = vtanh.pop %v816
    %v824 = vadd.f32 %v817, 1.0
    %v825 = vadd.f32 %v818, 1.0
    %v826 = vadd.f32 %v819, 1.0
    %v827 = vadd.f32 %v820, 1.0
    %v828 = vadd.f32 %v821, 1.0
    %v829 = vadd.f32 %v822, 1.0
    %v830 = vadd.f32 %v823, 1.0
    %v831 = vmul.f32 %v824, 0.5
    %v832 = vmul.f32 %v825, 0.5
    %v833 = vmul.f32 %v826, 0.5
    %v834 = vmul.f32 %v827, 0.5
    %v835 = vmul.f32 %v828, 0.5
    %v836 = vmul.f32 %v829, 0.5
    %v837 = vmul.f32 %v830, 0.5
    %838 = vst [vmem:[#allocation11] sm:$0xff] %v831
    %839 = vst [vmem:[#allocation11 + $0x8] sm:$0xff] %v832
    %840 = vst [vmem:[#allocation11 + $0x10] sm:$0xff] %v833
    %841 = vst [vmem:[#allocation11 + $0x18] sm:$0xff] %v834
    %842 = vst [vmem:[#allocation11 + $0x20] sm:$0xff] %v835
    %843 = vst [vmem:[#allocation11 + $0x28] sm:$0xff] %v836
    %844 = vst [vmem:[#allocation11 + $0x30] sm:$0xff] %v837
    // Predicated region
    $region50: #{tpu_custom_call.1} parent=1 // pred_check
      _
    $region51: #{tpu_custom_call.1} parent=1 // pred_check_branch
      %846 = sbr.rel (0) target = $region53
    $region52: #{tpu_custom_call.1} parent=1 // pred_region
      %s848 = ssub.s32 896, 896
      %849 = vsyncadd [#allocation4], %s848
      %s851 = sshll.u32 [#allocation11], 4
      %s852 = int_to_ptr.vmem [resolvable:$true] %s851
      %854 = dma.vmem_to_hbm [thread:$0]  %s852, 896, %s7, [#allocation4]
    $region53: #{tpu_custom_call.1} parent=1 // pred_fallthru
      _
    // Predicated region
    $region54: #{tpu_custom_call.1} parent=1 // pred_check
      _
    $region55: #{tpu_custom_call.1} parent=1 // pred_check_branch
      %856 = sbr.rel (0) target = $region57
    $region56: #{tpu_custom_call.1} parent=1 // pred_region
      %857 = dma.done [#allocation4], 896
    $region57: #{tpu_custom_call.1} parent=1 // pred_fallthru
      _
    %858 = vsyncpa [#allocation3], 1
    %859 = vsyncpa [#allocation6], 1
    %860 = vsyncpa [#allocation9], 1
    %861 = vsyncpa [#allocation4], 1

</llo_original>
